<compile_context>
chip_gen: v7x
topology: tpu7x:2x2x1
jax: 0.10.0
libtpu: 0.0.40
codegen_flags: <defaults>
</compile_context>

<pallas_src>
import functools

import numpy as np
import jax
import jax.numpy as jnp
from jax.experimental import pallas as pl
from jax.experimental.pallas import tpu as pltpu


def _roundup(v, m):
    return ((v + m - 1) // m) * m


# ----------------------------------------------------------------------------
# Fused kernel: conv stack + flatten + FC stack, single invocation.
#   x_ref : (H0*N, 128k)   activations, rows=(h,n), lanes=(w,c) zero-padded
#   w_ref : (R, 128k)      packed weight matrices (compute dtype)
#   b_ref : (Rb, 128k)     packed bias rows (float32)
# `layers` is a static (Python) list of per-layer descriptors with packed
# offsets/shapes; the whole network unrolls into straight-line MXU/VPU code.
# ----------------------------------------------------------------------------
def _fused_forward_kernel(x_ref, w_ref, b_ref, out_ref, *, layers, compute_dtype):
    cdt = compute_dtype
    x = x_ref[...]                                           # (H0*N, Lp0)

    for lyr in layers:
        kind = lyr["kind"]
        if kind == "conv":
            N, OH = lyr["N"], lyr["OH"]
            # strided layer: one tiny row-reorder matmul (0/1 matrix, exact in bf16)
            if lyr["s"] is not None:
                so, sr, sc = lyr["s"]
                x = jnp.dot(w_ref[so:so + sr, :sc], x,
                            preferred_element_type=jnp.float32).astype(cdt)
            # vertical taps are contiguous row slices; fuse them along lanes
            xg = jnp.concatenate(
                [x[st:st + OH * N, :] for st in lyr["tap_starts"]], axis=1)
            mo, mr, mc = lyr["m"]
            acc = jnp.dot(xg, w_ref[mo:mo + mr, :mc],
                          preferred_element_type=jnp.float32)   # f32 accumulation
            bo, _, bc = lyr["b"]
            x = jnp.maximum(acc + b_ref[bo:bo + 1, :bc], 0.0).astype(cdt)
        else:
            if kind == "fc1":
                # torch.flatten(x, 1) fused: per-sample rows gathered by
                # contiguous slices and concatenated along lanes.
                N, OH = lyr["N"], lyr["OH"]
                x = jnp.concatenate(
                    [x[oh * N:(oh + 1) * N, :] for oh in range(OH)], axis=1)
            mo, mr, mc = lyr["m"]
            acc = jnp.dot(x, w_ref[mo:mo + mr, :mc],
                          preferred_element_type=jnp.float32)
            bo, _, bc = lyr["b"]
            x = acc + b_ref[bo:bo + 1, :bc]
            if lyr["act"]:
                x = jnp.maximum(x, 0.0).astype(cdt)
            # last layer: output_activation = identity, stays f32

    out_ref[...] = x.astype(out_ref.dtype)


# ----------------------------------------------------------------------------
# One-time parameter preparation: builds the banded/fused weight matrices and
# packs everything into two contiguous, tile-aligned buffers.
# ----------------------------------------------------------------------------
def prepare_params(x_shape, conv_params, fc_params, compute_dtype=jnp.bfloat16):
    N, Cin, H, W = (int(s) for s in x_shape)
    w_arrs, b_arrs, layers = [], [], []

    def add_w(a):
        w_arrs.append(np.asarray(a, np.float32))
        return len(w_arrs) - 1

    def add_b(a):
        b_arrs.append(np.asarray(a, np.float32).reshape(1, -1))
        return len(b_arrs) - 1

    C, curH, curW = Cin, H, W
    Lp_in = _roundup(curW * C, 128)          # padded lane width of network input
    lane_pad0 = Lp_in

    for (w, b, stride) in conv_params:
        w_np = np.asarray(w, np.float32)
        b_np = np.asarray(b, np.float32)
        OC, IC, KH, KW = w_np.shape
        assert IC == C
        stride = int(stride)
        OH = (curH - KH) // stride + 1
        OW = (curW - KW) // stride + 1
        Lp_out = _roundup(OW * OC, 128)

        # ---- vertical tap selection --------------------------------------
        if stride == 1:
            s_idx = None
            tap_starts = [ti * N for ti in range(KH)]          # contiguous slices
        else:
            # reorder rows to (h % stride, h // stride, n); afterwards every
            # tap is again a contiguous slice.  S is tiny: (curH*N, curH*N).
            cnt = [len(range(p, curH, stride)) for p in range(stride)]
            class_start = [0] * stride
            for p in range(1, stride):
                class_start[p] = class_start[p - 1] + cnt[p - 1]
            tap_starts = [int((class_start[ti % stride] + ti // stride) * N)
                          for ti in range(KH)]
            S = np.zeros((curH * N, curH * N), np.float32)
            r = 0
            for p in range(stride):
                for h in range(p, curH, stride):
                    for n in range(N):
                        S[r, h * N + n] = 1.0
                        r += 1
            s_idx = add_w(S)

        # ---- fused banded conv weight:  (KH * Lp_in, Lp_out) --------------
        # M[ti*Lp + wc*Cin + c, ow*OC + oc] = w[oc, c, ti, wc - stride*ow]
        M = np.zeros((KH * Lp_in, Lp_out), np.float32)
        for ti in range(KH):
            for ow in range(OW):
                for tj in range(KW):
                    wc = stride * ow + tj
                    M[ti * Lp_in + wc * IC: ti * Lp_in + (wc + 1) * IC,
                      ow * OC:(ow + 1) * OC] = w_np[:, :, ti, tj].T
        m_idx = add_w(M)

        brow = np.zeros((1, Lp_out), np.float32)
        brow[0, :OW * OC] = np.tile(b_np, OW)
        b_idx = add_b(brow)

        layers.append(dict(kind="conv", N=N, OH=OH,
                           tap_starts=tap_starts, s_idx=s_idx,
                           m_idx=m_idx, b_idx=b_idx))
        C, curH, curW, Lp_in = OC, OH, OW, Lp_out

    # ---- first FC layer, fused with torch.flatten(x, 1) (features = c,h,w) --
    w1, b1 = fc_params[0]
    w1_np = np.asarray(w1, np.float32)
    out1 = w1_np.shape[0]
    assert w1_np.shape[1] == C * curH * curW
    w1_r = w1_np.reshape(out1, C, curH, curW)                  # (out, c, oh, ow)
    W1all = np.zeros((curH * Lp_in, out1), np.float32)
    for oh in range(curH):
        blk = np.transpose(w1_r[:, :, oh, :], (2, 1, 0)).reshape(curW * C, out1)
        W1all[oh * Lp_in: oh * Lp_in + curW * C, :] = blk
    layers.append(dict(kind="fc1", N=N, OH=curH,
                       m_idx=add_w(W1all), b_idx=add_b(b1),
                       act=len(fc_params) > 1))

    # ---- remaining FC layers (pre-transposed once) --------------------------
    for i, (wf, bf) in enumerate(fc_params[1:]):
        layers.append(dict(kind="fc",
                           m_idx=add_w(np.asarray(wf, np.float32).T),
                           b_idx=add_b(bf),
                           act=i < len(fc_params) - 2))

    # ---- pack into single weight / bias buffers ((8,128)-aligned offsets) ---
    def pack(arrs, dtype):
        width = max(128, max(_roundup(a.shape[1], 128) for a in arrs))
        offs, rows = [], 0
        for a in arrs:
            offs.append(rows)
            rows += _roundup(a.shape[0], 8)
        rows = max(8, _roundup(rows, 8))
        buf = np.zeros((rows, width), np.float32)
        for off, a in zip(offs, arrs):
            buf[off:off + a.shape[0], :a.shape[1]] = a
        return jnp.asarray(buf, dtype), offs, [a.shape for a in arrs]

    wpack, w_offs, w_shapes = pack(w_arrs, compute_dtype)
    bpack, b_offs, b_shapes = pack(b_arrs, jnp.float32)        # biases stay f32

    for lyr in layers:
        si = lyr.pop("s_idx", None)
        lyr["s"] = None if si is None else \
            (int(w_offs[si]), int(w_shapes[si][0]), int(w_shapes[si][1]))
        mi = lyr.pop("m_idx")
        lyr["m"] = (int(w_offs[mi]), int(w_shapes[mi][0]), int(w_shapes[mi][1]))
        bi = lyr.pop("b_idx")
        lyr["b"] = (int(b_offs[bi]), int(b_shapes[bi][0]), int(b_shapes[bi][1]))

    meta = dict(layers=layers, batch=N,
                out_dim=int(np.asarray(fc_params[-1][1]).shape[0]),
                lane_pad=lane_pad0, compute_dtype=compute_dtype)
    return wpack, bpack, meta


# ----------------------------------------------------------------------------
# Forward wrapper: one tiny input relayout + ONE pallas_call (3 inputs total).
# ----------------------------------------------------------------------------
def build_forward(meta, wpack, bpack):
    kernel = functools.partial(_fused_forward_kernel,
                               layers=meta["layers"],
                               compute_dtype=meta["compute_dtype"])
    N, out_dim, Lp0 = meta["batch"], meta["out_dim"], meta["lane_pad"]
    cdt = meta["compute_dtype"]

    def _spec(shape):
        nd = len(shape)
        return pl.BlockSpec(shape, lambda i, nd=nd: (0,) * nd)

    @jax.jit
    def forward(x):
        n, c, h, w = x.shape
        # NCHW -> rows=(h,n), lanes=(w,c), zero-padded to full 128-lane tiles.
        x2d = jnp.transpose(x, (2, 0, 3, 1)).reshape(h * n, w * c)
        x2d = jnp.pad(x2d, ((0, 0), (0, Lp0 - w * c))).astype(cdt)
        return pl.pallas_call(
            kernel,
            out_shape=jax.ShapeDtypeStruct((N, out_dim), jnp.float32),
            grid=(1,),
            in_specs=[_spec(x2d.shape), _spec(wpack.shape), _spec(bpack.shape)],
            out_specs=_spec((N, out_dim)),
            compiler_params=pltpu.CompilerParams(
                dimension_semantics=("arbitrary",)),
        )(x2d, wpack, bpack)

    return forward


# ----------------------------------------------------------------------------
# Pure-JAX reference for correctness checking
# ----------------------------------------------------------------------------
def reference_forward(x, conv_params, fc_params):
    for (w, b, stride) in conv_params:
        x = jax.lax.conv_general_dilated(
            x, w, (stride, stride), "VALID",
            dimension_numbers=("NCHW", "OIHW", "NCHW"))
        x = jnp.maximum(x + b[None, :, None, None], 0.0)
    x = x.reshape(x.shape[0], -1)
    for (w, b) in fc_params[:-1]:
        x = jnp.maximum(x @ w.T + b, 0.0)
    w, b = fc_params[-1]
    return x @ w.T + b


# ----------------------------------------------------------------------------
# Deterministic parameter construction (PyTorch-style uniform(-1/sqrt(fan_in)))
# ----------------------------------------------------------------------------
def make_params(key, conv_channels, fc_dims):
    conv_params = []
    for i in range(len(conv_channels) - 1):
        in_ch = conv_channels[i][0]
        out_ch, kw, stride = conv_channels[i + 1]
        key, kw_key, kb_key = jax.random.split(key, 3)
        bound = 1.0 / jnp.sqrt(in_ch * kw * kw)
        w = jax.random.uniform(kw_key, (out_ch, in_ch, kw, kw),
                               jnp.float32, -bound, bound)
        b = jax.random.uniform(kb_key, (out_ch,), jnp.float32, -bound, bound)
        conv_params.append((w, b, stride))

    fc_params = []
    for i in range(1, len(fc_dims)):
        key, kw_key, kb_key = jax.random.split(key, 3)
        bound = 1.0 / jnp.sqrt(fc_dims[i - 1])
        w = jax.random.uniform(kw_key, (fc_dims[i], fc_dims[i - 1]),
                               jnp.float32, -bound, bound)
        b = jax.random.uniform(kb_key, (fc_dims[i],), jnp.float32, -bound, bound)
        fc_params.append((w, b))
    return conv_params, fc_params


if __name__ == "__main__":
    key = jax.random.PRNGKey(0)
    key, xkey = jax.random.split(key)

    # conv_channels: [(in_ch,_,_), (out_ch, kernel_width, stride), ...]
    conv_channels = [(4, 0, 0), (8, 3, 1), (8, 3, 2)]
    # input 16x16 -> conv(3,s1) -> 14x14 -> conv(3,s2) -> 6x6 ; flatten = 8*6*6
    fc_dims = [8 * 6 * 6, 32, 10]

    x = jax.random.normal(xkey, (2, 4, 16, 16), jnp.float32)
    conv_params, fc_params = make_params(key, conv_channels, fc_dims)
    ref = reference_forward(x, conv_params, fc_params)

    # --- float32 mode: tight correctness check --------------------------------
    wpack32, bpack32, meta32 = prepare_params(x.shape, conv_params, fc_params,
                                              compute_dtype=jnp.float32)
    out32 = jax.block_until_ready(build_forward(meta32, wpack32, bpack32)(x))
    assert out32.shape == (2, 10)
    assert jnp.allclose(out32, ref, atol=1e-3, rtol=1e-3), "f32 mismatch vs reference"

    # --- bfloat16 mode (default / performance path): MXU-native inputs,
    #     f32 accumulation + f32 biases; validated with relative-L2.
    wpackbf, bpackbf, metabf = prepare_params(x.shape, conv_params, fc_params,
                                              compute_dtype=jnp.bfloat16)
    outbf = jax.block_until_ready(build_forward(metabf, wpackbf, bpackbf)(x))
    rel = jnp.linalg.norm(outbf - ref) / jnp.linalg.norm(ref)
    assert outbf.shape == (2, 10)
    assert rel < 0.1, f"bf16 relative error too large: {rel}"

    print("KERNEL_OK")
</pallas_src>

<mosaic_0001>
module attributes {stable_mosaic.version = 11 : i64} {
  func.func @_fused_forward_kernel(%arg0: i32, %arg1: memref<32x128xf32, #tpu.memory_space<vmem>>, %arg2: memref<1600x128xf32, #tpu.memory_space<vmem>>, %arg3: memref<32x128xf32, #tpu.memory_space<vmem>>, %arg4: memref<2x10xf32, #tpu.memory_space<vmem>>) attributes {dimension_semantics = [#tpu.dimension_semantics<arbitrary>], iteration_bounds = array<i64: 1>, scalar_prefetch = 0 : i64, scratch_operands = 0 : i64, tpu.core_type = #tpu.core_type<tc>, window_params = [{pipeline_mode = #tpu.pipeline_mode<synchronous>, transform_indices = @transform_0, window_bounds = array<i64: 32, 128>}, {pipeline_mode = #tpu.pipeline_mode<synchronous>, transform_indices = @transform_1, window_bounds = array<i64: 1600, 128>}, {pipeline_mode = #tpu.pipeline_mode<synchronous>, transform_indices = @transform_2, window_bounds = array<i64: 32, 128>}, {pipeline_mode = #tpu.pipeline_mode<synchronous>, transform_indices = @transform_3, window_bounds = array<i64: 2, 10>}]} {
    %c0 = arith.constant 0 : index
    %c0_0 = arith.constant 0 : index
    %0 = vector.load %arg1[%c0, %c0_0] : memref<32x128xf32, #tpu.memory_space<vmem>>, vector<32x128xf32>
    %1 = vector.extract_strided_slice %0 {offsets = [0, 0], sizes = [28, 128], strides = [1, 1]} : vector<32x128xf32> to vector<28x128xf32>
    %2 = vector.extract_strided_slice %0 {offsets = [2, 0], sizes = [28, 128], strides = [1, 1]} : vector<32x128xf32> to vector<28x128xf32>
    %3 = vector.extract_strided_slice %0 {offsets = [4, 0], sizes = [28, 128], strides = [1, 1]} : vector<32x128xf32> to vector<28x128xf32>
    %4 = tpu.concatenate %1, %2, %3 in 1 : vector<28x128xf32>, vector<28x128xf32>, vector<28x128xf32> -> vector<28x384xf32>
    %c0_1 = arith.constant 0 : index
    %c0_2 = arith.constant 0 : index
    %5 = vector.load %arg2[%c0_1, %c0_2] : memref<1600x128xf32, #tpu.memory_space<vmem>>, vector<384x128xf32>
    %cst = arith.constant dense<0.000000e+00> : vector<28x128xf32>
    %6 = tpu.matmul %4, %5, %cst {dimension_numbers = #tpu.dot_dimension_numbers<[1], [0], [0], [1], [0, 0, 1, 1], [], []>} : vector<28x384xf32>, vector<384x128xf32>, vector<28x128xf32> -> vector<28x128xf32>
    %c0_3 = arith.constant 0 : index
    %c0_4 = arith.constant 0 : index
    %7 = vector.load %arg3[%c0_3, %c0_4] : memref<32x128xf32, #tpu.memory_space<vmem>>, vector<1x128xf32>
    %8 = vector.broadcast %7 : vector<1x128xf32> to vector<28x128xf32>
    %9 = arith.addf %6, %8 : vector<28x128xf32>
    %cst_5 = arith.constant 0.000000e+00 : f32
    %10 = vector.broadcast %cst_5 : f32 to vector<28x128xf32>
    %11 = arith.maximumf %9, %10 : vector<28x128xf32>
    %c384 = arith.constant 384 : index
    %c0_6 = arith.constant 0 : index
    %12 = vector.load %arg2[%c384, %c0_6] : memref<1600x128xf32, #tpu.memory_space<vmem>>, vector<28x28xf32>
    %cst_7 = arith.constant dense<0.000000e+00> : vector<28x128xf32>
    %13 = tpu.matmul %12, %11, %cst_7 {dimension_numbers = #tpu.dot_dimension_numbers<[1], [0], [0], [1], [0, 0, 1, 1], [], []>} : vector<28x28xf32>, vector<28x128xf32>, vector<28x128xf32> -> vector<28x128xf32>
    %14 = vector.extract_strided_slice %13 {offsets = [0, 0], sizes = [12, 128], strides = [1, 1]} : vector<28x128xf32> to vector<12x128xf32>
    %15 = vector.extract_strided_slice %13 {offsets = [14, 0], sizes = [12, 128], strides = [1, 1]} : vector<28x128xf32> to vector<12x128xf32>
    %16 = vector.extract_strided_slice %13 {offsets = [2, 0], sizes = [12, 128], strides = [1, 1]} : vector<28x128xf32> to vector<12x128xf32>
    %17 = tpu.concatenate %14, %15, %16 in 1 : vector<12x128xf32>, vector<12x128xf32>, vector<12x128xf32> -> vector<12x384xf32>
    %c416 = arith.constant 416 : index
    %c0_8 = arith.constant 0 : index
    %18 = vector.load %arg2[%c416, %c0_8] : memref<1600x128xf32, #tpu.memory_space<vmem>>, vector<384x128xf32>
    %cst_9 = arith.constant dense<0.000000e+00> : vector<12x128xf32>
    %19 = tpu.matmul %17, %18, %cst_9 {dimension_numbers = #tpu.dot_dimension_numbers<[1], [0], [0], [1], [0, 0, 1, 1], [], []>} : vector<12x384xf32>, vector<384x128xf32>, vector<12x128xf32> -> vector<12x128xf32>
    %c8 = arith.constant 8 : index
    %c0_10 = arith.constant 0 : index
    %20 = vector.load %arg3[%c8, %c0_10] : memref<32x128xf32, #tpu.memory_space<vmem>>, vector<1x128xf32>
    %21 = vector.broadcast %20 : vector<1x128xf32> to vector<12x128xf32>
    %22 = arith.addf %19, %21 : vector<12x128xf32>
    %cst_11 = arith.constant 0.000000e+00 : f32
    %23 = vector.broadcast %cst_11 : f32 to vector<12x128xf32>
    %24 = arith.maximumf %22, %23 : vector<12x128xf32>
    %25 = vector.extract_strided_slice %24 {offsets = [0, 0], sizes = [2, 128], strides = [1, 1]} : vector<12x128xf32> to vector<2x128xf32>
    %26 = vector.extract_strided_slice %24 {offsets = [2, 0], sizes = [2, 128], strides = [1, 1]} : vector<12x128xf32> to vector<2x128xf32>
    %27 = vector.extract_strided_slice %24 {offsets = [4, 0], sizes = [2, 128], strides = [1, 1]} : vector<12x128xf32> to vector<2x128xf32>
    %28 = vector.extract_strided_slice %24 {offsets = [6, 0], sizes = [2, 128], strides = [1, 1]} : vector<12x128xf32> to vector<2x128xf32>
    %29 = vector.extract_strided_slice %24 {offsets = [8, 0], sizes = [2, 128], strides = [1, 1]} : vector<12x128xf32> to vector<2x128xf32>
    %30 = vector.extract_strided_slice %24 {offsets = [10, 0], sizes = [2, 128], strides = [1, 1]} : vector<12x128xf32> to vector<2x128xf32>
    %31 = tpu.concatenate %25, %26, %27, %28, %29, %30 in 1 : vector<2x128xf32>, vector<2x128xf32>, vector<2x128xf32>, vector<2x128xf32>, vector<2x128xf32>, vector<2x128xf32> -> vector<2x768xf32>
    %c800 = arith.constant 800 : index
    %c0_12 = arith.constant 0 : index
    %32 = vector.load %arg2[%c800, %c0_12] : memref<1600x128xf32, #tpu.memory_space<vmem>>, vector<768x32xf32>
    %cst_13 = arith.constant dense<0.000000e+00> : vector<2x32xf32>
    %33 = tpu.matmul %31, %32, %cst_13 {dimension_numbers = #tpu.dot_dimension_numbers<[1], [0], [0], [1], [0, 0, 1, 1], [], []>} : vector<2x768xf32>, vector<768x32xf32>, vector<2x32xf32> -> vector<2x32xf32>
    %c16 = arith.constant 16 : index
    %c0_14 = arith.constant 0 : index
    %34 = vector.load %arg3[%c16, %c0_14] : memref<32x128xf32, #tpu.memory_space<vmem>>, vector<1x32xf32>
    %35 = vector.broadcast %34 : vector<1x32xf32> to vector<2x32xf32>
    %36 = arith.addf %33, %35 : vector<2x32xf32>
    %cst_15 = arith.constant 0.000000e+00 : f32
    %37 = vector.broadcast %cst_15 : f32 to vector<2x32xf32>
    %38 = arith.maximumf %36, %37 : vector<2x32xf32>
    %c1568 = arith.constant 1568 : index
    %c0_16 = arith.constant 0 : index
    %39 = vector.load %arg2[%c1568, %c0_16] : memref<1600x128xf32, #tpu.memory_space<vmem>>, vector<32x10xf32>
    %cst_17 = arith.constant dense<0.000000e+00> : vector<2x10xf32>
    %40 = tpu.matmul %38, %39, %cst_17 {dimension_numbers = #tpu.dot_dimension_numbers<[1], [0], [0], [1], [0, 0, 1, 1], [], []>} : vector<2x32xf32>, vector<32x10xf32>, vector<2x10xf32> -> vector<2x10xf32>
    %c24 = arith.constant 24 : index
    %c0_18 = arith.constant 0 : index
    %41 = vector.load %arg3[%c24, %c0_18] : memref<32x128xf32, #tpu.memory_space<vmem>>, vector<1x10xf32>
    %42 = vector.broadcast %41 : vector<1x10xf32> to vector<2x10xf32>
    %43 = arith.addf %40, %42 : vector<2x10xf32>
    %c0_19 = arith.constant 0 : index
    %c0_20 = arith.constant 0 : index
    %44 = vector.load %arg4[%c0_19, %c0_20] : memref<2x10xf32, #tpu.memory_space<vmem>>, vector<2x10xf32>
    tpu.vector_store %arg4[%c0_19, %c0_20], %43 {strides = array<i32>} : memref<2x10xf32, #tpu.memory_space<vmem>>, vector<2x10xf32>,
    return
  }
  func.func @transform_0(%arg0: i32) -> (i32, i32) {
    %c0_i32 = arith.constant 0 : i32
    %c0_i32_0 = arith.constant 0 : i32
    %c0_i32_1 = arith.constant 0 : i32
    return %c0_i32, %c0_i32_0 : i32, i32
  }
  func.func @transform_1(%arg0: i32) -> (i32, i32) {
    %c0_i32 = arith.constant 0 : i32
    %c0_i32_0 = arith.constant 0 : i32
    %c0_i32_1 = arith.constant 0 : i32
    return %c0_i32, %c0_i32_0 : i32, i32
  }
  func.func @transform_2(%arg0: i32) -> (i32, i32) {
    %c0_i32 = arith.constant 0 : i32
    %c0_i32_0 = arith.constant 0 : i32
    %c0_i32_1 = arith.constant 0 : i32
    return %c0_i32, %c0_i32_0 : i32, i32
  }
  func.func @transform_3(%arg0: i32) -> (i32, i32) {
    %c0_i32 = arith.constant 0 : i32
    %c0_i32_0 = arith.constant 0 : i32
    %c0_i32_1 = arith.constant 0 : i32
    return %c0_i32, %c0_i32_0 : i32, i32
  }
}

</mosaic_0001>

<llo_original>
// kernel: forward.1
$region0: #{forward.1}
  #allocation0 [shape = 'u32[]', space=smem, size = 0x4, offset = 0x4, fixed_abs, tag = 'smem constant byte address 0x4 - core index']
  #allocation1 [shape = 'u32[144,128]{1,0:T(1,128)}', space=vmem, size = 0x12000, scoped, tag = 'internal scratch']
  %s0 = inlined_call_operand.vmem [shape: f32[32,128], index: 0, kind: input, shape index: {}]
  %s1 = inlined_call_operand.hbm [shape: f32[1600,128], index: 1, kind: input, shape index: {}]
  %s2 = inlined_call_operand.vmem [shape: f32[32,128], index: 2, kind: input, shape index: {}]
  %s3 = inlined_call_operand.hbm [shape: f32[2,10], index: 3, kind: output, shape index: {}]
  %s4 = sld [smem:[#allocation0]]
  $region26: #{forward.1} parent=0
    _
  %s6 = ssub.s32 1, %s4
  %s7 = scalar_select 0, %s6, %s4
  $region1: #{forward.1} parent=0
    #allocation2 [shape = 'u8[819200]{0}', space=vmem, size = 0xc8000, scoped, tag = 'input window, operand 1, single buffered']
    #allocation3 [shape = 's32[1]{0}', space=sflag, size = 0x4, scoped, tag = 'scoped memory for forward.1']
    #allocation4 [shape = 's32[1]{0}', space=sflag, size = 0x4, scoped, tag = 'scoped memory for forward.1']
    #allocation5 [shape = 'u8[1024]{0}', space=vmem, size = 0x400, scoped, tag = 'output window, operand 0, single buffered']
    %8 = vsyncpa [#allocation3], 0
    %9 = vsyncpa [#allocation4], 0
    // Predicated region
    $region2: #{forward.1} parent=1 // pred_check
      _
    $region3: #{forward.1} parent=1 // pred_check_branch
      %11 = sbr.rel (0) target = $region5
    $region4: #{forward.1} parent=1 // pred_region
      _
    $region5: #{forward.1} parent=1 // pred_fallthru
      _
    // Predicated region
    $region6: #{forward.1} parent=1 // pred_check
      _
    $region7: #{forward.1} parent=1 // pred_check_branch
      %13 = sbr.rel (0) target = $region9
    $region8: #{forward.1} parent=1 // pred_region
      %s15 = ssub.s32 25600, 25600
      %16 = vsyncadd [#allocation3], %s15
      %s17 = sshll.u32 [#allocation2], 4
      %s18 = int_to_ptr.vmem [resolvable:$true] %s17
      %23 = dma.hbm_to_vmem [thread:$0]  %s1, 25600, %s18, [#allocation3], 128, 128, 8
    $region9: #{forward.1} parent=1 // pred_fallthru
      _
    // Predicated region
    $region10: #{forward.1} parent=1 // pred_check
      _
    $region11: #{forward.1} parent=1 // pred_check_branch
      %25 = sbr.rel (0) target = $region13
    $region12: #{forward.1} parent=1 // pred_region
      _
    $region13: #{forward.1} parent=1 // pred_fallthru
      _
    // Predicated region
    $region14: #{forward.1} parent=1 // pred_check
      _
    $region15: #{forward.1} parent=1 // pred_check_branch
      %27 = sbr.rel (0) target = $region17
    $region16: #{forward.1} parent=1 // pred_region
      %28 = dma.done [#allocation3], 25600
    $region17: #{forward.1} parent=1 // pred_fallthru
      _
    %v29 = vld [vmem:[%s0] sm:$0xff]
    %v30 = vld [vmem:[%s0 + $0x8] sm:$0xff]
    %v31 = vld [vmem:[%s0 + $0x10] sm:$0xff]
    %v32 = vld [vmem:[%s0 + $0x18] sm:$0xff]
    %vm37 = vcmask 1045504
    %v38 = vrot.slane %v29, 2
    %v39 = vrot.slane %v30, 2
    %v40 = vsel %vm37, %v38, %v39
    %v41 = vrot.slane %v31, 2
    %v42 = vsel %vm37, %v39, %v41
    %v43 = vrot.slane %v32, 2
    %v44 = vsel %vm37, %v41, %v43
    %vm49 = vcmask 1043456
    %v50 = vrot.slane %v29, 4
    %v51 = vrot.slane %v30, 4
    %v52 = vsel %vm49, %v50, %v51
    %v53 = vrot.slane %v31, 4
    %v54 = vsel %vm49, %v51, %v53
    %v55 = vrot.slane %v32, 4
    %v56 = vsel %vm49, %v53, %v55
    %v61 = vld [vmem:[#allocation2] sm:$0xff]
    %v62 = vld [vmem:[#allocation2 + $0x8] sm:$0xff]
    %v63 = vld [vmem:[#allocation2 + $0x10] sm:$0xff]
    %v64 = vld [vmem:[#allocation2 + $0x18] sm:$0xff]
    %v65 = vld [vmem:[#allocation2 + $0x20] sm:$0xff]
    %v66 = vld [vmem:[#allocation2 + $0x28] sm:$0xff]
    %v67 = vld [vmem:[#allocation2 + $0x30] sm:$0xff]
    %v68 = vld [vmem:[#allocation2 + $0x38] sm:$0xff]
    %v69 = vld [vmem:[#allocation2 + $0x40] sm:$0xff]
    %v70 = vld [vmem:[#allocation2 + $0x48] sm:$0xff]
    %v71 = vld [vmem:[#allocation2 + $0x50] sm:$0xff]
    %v72 = vld [vmem:[#allocation2 + $0x58] sm:$0xff]
    %v73 = vld [vmem:[#allocation2 + $0x60] sm:$0xff]
    %v74 = vld [vmem:[#allocation2 + $0x68] sm:$0xff]
    %v75 = vld [vmem:[#allocation2 + $0x70] sm:$0xff]
    %v76 = vld [vmem:[#allocation2 + $0x78] sm:$0xff]
    %v77 = vld [vmem:[#allocation2 + $0x80] sm:$0xff]
    %v78 = vld [vmem:[#allocation2 + $0x88] sm:$0xff]
    %v79 = vld [vmem:[#allocation2 + $0x90] sm:$0xff]
    %v80 = vld [vmem:[#allocation2 + $0x98] sm:$0xff]
    %v81 = vld [vmem:[#allocation2 + $0xa0] sm:$0xff]
    %v82 = vld [vmem:[#allocation2 + $0xa8] sm:$0xff]
    %v83 = vld [vmem:[#allocation2 + $0xb0] sm:$0xff]
    %v84 = vld [vmem:[#allocation2 + $0xb8] sm:$0xff]
    %v85 = vld [vmem:[#allocation2 + $0xc0] sm:$0xff]
    %v86 = vld [vmem:[#allocation2 + $0xc8] sm:$0xff]
    %v87 = vld [vmem:[#allocation2 + $0xd0] sm:$0xff]
    %v88 = vld [vmem:[#allocation2 + $0xd8] sm:$0xff]
    %v89 = vld [vmem:[#allocation2 + $0xe0] sm:$0xff]
    %v90 = vld [vmem:[#allocation2 + $0xe8] sm:$0xff]
    %v91 = vld [vmem:[#allocation2 + $0xf0] sm:$0xff]
    %v92 = vld [vmem:[#allocation2 + $0xf8] sm:$0xff]
    %v93 = vld [vmem:[#allocation2 + $0x100] sm:$0xff]
    %v94 = vld [vmem:[#allocation2 + $0x108] sm:$0xff]
    %v95 = vld [vmem:[#allocation2 + $0x110] sm:$0xff]
    %v96 = vld [vmem:[#allocation2 + $0x118] sm:$0xff]
    %v97 = vld [vmem:[#allocation2 + $0x120] sm:$0xff]
    %v98 = vld [vmem:[#allocation2 + $0x128] sm:$0xff]
    %v99 = vld [vmem:[#allocation2 + $0x130] sm:$0xff]
    %v100 = vld [vmem:[#allocation2 + $0x138] sm:$0xff]
    %v101 = vld [vmem:[#allocation2 + $0x140] sm:$0xff]
    %v102 = vld [vmem:[#allocation2 + $0x148] sm:$0xff]
    %v103 = vld [vmem:[#allocation2 + $0x150] sm:$0xff]
    %v104 = vld [vmem:[#allocation2 + $0x158] sm:$0xff]
    %v105 = vld [vmem:[#allocation2 + $0x160] sm:$0xff]
    %v106 = vld [vmem:[#allocation2 + $0x168] sm:$0xff]
    %v107 = vld [vmem:[#allocation2 + $0x170] sm:$0xff]
    %v108 = vld [vmem:[#allocation2 + $0x178] sm:$0xff]
    %v109 = vld [vmem:[%s2] sm:$0x1]
    %v110 = vlaneseq
    %v111 = vshrl.u32 %v110, 7
    %v112 = vsub.s32 0, %v111
    %v113 = vrot.slane %v109, %v112
    %114 = vmatprep.subr.mxu0 0.0
    %115 = vmatpush1.msra.mxu0 %v61
    %116 = vmatprep.subr.mxu0 0.0
    %117 = vmatpush1.msra.mxu0 %v62
    %118 = vmatprep.subr.mxu0 0.0
    %119 = vmatpush1.msra.mxu0 %v63
    %120 = vmatprep.subr.mxu0 0.0
    %121 = vmatpush1.msra.mxu0 %v64
    %122 = vmatprep.subr.mxu0 0.0
    %123 = vmatpush1.msra.mxu0 %v65
    %124 = vmatprep.subr.mxu0 0.0
    %125 = vmatpush1.msra.mxu0 %v66
    %126 = vmatprep.subr.mxu0 0.0
    %127 = vmatpush1.msra.mxu0 %v67
    %128 = vmatprep.subr.mxu0 0.0
    %129 = vmatpush1.msra.mxu0 %v68
    %130 = vmatprep.subr.mxu0 0.0
    %131 = vmatpush1.msra.mxu0 %v69
    %132 = vmatprep.subr.mxu0 0.0
    %133 = vmatpush1.msra.mxu0 %v70
    %134 = vmatprep.subr.mxu0 0.0
    %135 = vmatpush1.msra.mxu0 %v71
    %136 = vmatprep.subr.mxu0 0.0
    %137 = vmatpush1.msra.mxu0 %v72
    %138 = vmatprep.subr.mxu0 0.0
    %139 = vmatpush1.msra.mxu0 %v73
    %140 = vmatprep.subr.mxu0 0.0
    %141 = vmatpush1.msra.mxu0 %v74
    %142 = vmatprep.subr.mxu0 0.0
    %143 = vmatpush1.msra.mxu0 %v75
    %144 = vmatprep.subr.mxu0 0.0
    %145 = vmatpush1.msra.mxu0 %v76
    %146 = vmatprep.subr.mxu0 0.0
    %147 = vmatpush1.msra.mxu0 %v77
    %148 = vmatprep.subr.mxu0 0.0
    %149 = vmatpush1.msra.mxu0 %v78
    %150 = vmatprep.subr.mxu0 0.0
    %151 = vmatpush1.msra.mxu0 %v79
    %152 = vmatprep.subr.mxu0 0.0
    %153 = vmatpush1.msra.mxu0 %v80
    %154 = vmatprep.subr.mxu0 0.0
    %155 = vmatpush1.msra.mxu0 %v81
    %156 = vmatprep.subr.mxu0 0.0
    %157 = vmatpush1.msra.mxu0 %v82
    %158 = vmatprep.subr.mxu0 0.0
    %159 = vmatpush1.msra.mxu0 %v83
    %160 = vmatprep.subr.mxu0 0.0
    %161 = vmatpush1.msra.mxu0 %v84
    %162 = vmatprep.subr.mxu0 0.0
    %163 = vmatpush1.msra.mxu0 %v85
    %164 = vmatprep.subr.mxu0 0.0
    %165 = vmatpush1.msra.mxu0 %v86
    %166 = vmatprep.subr.mxu0 0.0
    %167 = vmatpush1.msra.mxu0 %v87
    %168 = vmatprep.subr.mxu0 0.0
    %169 = vmatpush1.msra.mxu0 %v88
    %170 = vmatprep.subr.mxu0 0.0
    %171 = vmatpush1.msra.mxu0 %v89
    %172 = vmatprep.subr.mxu0 0.0
    %173 = vmatpush1.msra.mxu0 %v90
    %174 = vmatprep.subr.mxu0 0.0
    %175 = vmatpush1.msra.mxu0 %v91
    %176 = vmatprep.subr.mxu0 0.0
    %177 = vmatpush1.msra.mxu0 %v92
    %178 = vmatprep.mubr.f32.mxu0 %v40
    %179 = vmatmul.mubr.f32.gmra.mrb[0].mxu0 %v29
    %v180 = vpop.f32.mrb[0].mxu0
    %v181 = vadd.f32 %v113, %v180
    %v182 = vpop.f32.mrb[0].mxu0
    %183 = vmatprep.mubr.f32.mxu0 %v42
    %184 = vmatmul.mubr.f32.gmra.mrb[0].mxu0 %v30
    %v185 = vpop.f32.mrb[0].mxu0
    %v186 = vadd.f32 %v113, %v185
    %v187 = vpop.f32.mrb[0].mxu0
    %188 = vmatprep.mubr.f32.mxu0 %v44
    %189 = vmatmul.mubr.f32.gmra.mrb[0].mxu0 %v31
    %v190 = vpop.f32.mrb[0].mxu0
    %v191 = vadd.f32 %v113, %v190
    %v192 = vpop.f32.mrb[0].mxu0
    %193 = vmatprep.mubr.f32.mxu0 %v43
    %194 = vmatmul.mubr.f32.gmra.mrb[0].mxu0 %v32
    %v195 = vpop.f32.mrb[0].mxu0
    %v196 = vadd.f32 %v113, %v195
    %v197 = vpop.f32.mrb[0].mxu0
    %198 = vdwg.mxu0
    %199 = vmatprep.subr.mxu0 0.0
    %200 = vmatpush1.msra.mxu0 %v93
    %201 = vmatprep.subr.mxu0 0.0
    %202 = vmatpush1.msra.mxu0 %v94
    %203 = vmatprep.subr.mxu0 0.0
    %204 = vmatpush1.msra.mxu0 %v95
    %205 = vmatprep.subr.mxu0 0.0
    %206 = vmatpush1.msra.mxu0 %v96
    %207 = vmatprep.subr.mxu0 0.0
    %208 = vmatpush1.msra.mxu0 %v97
    %209 = vmatprep.subr.mxu0 0.0
    %210 = vmatpush1.msra.mxu0 %v98
    %211 = vmatprep.subr.mxu0 0.0
    %212 = vmatpush1.msra.mxu0 %v99
    %213 = vmatprep.subr.mxu0 0.0
    %214 = vmatpush1.msra.mxu0 %v100
    %215 = vmatprep.subr.mxu0 0.0
    %216 = vmatpush1.msra.mxu0 %v101
    %217 = vmatprep.subr.mxu0 0.0
    %218 = vmatpush1.msra.mxu0 %v102
    %219 = vmatprep.subr.mxu0 0.0
    %220 = vmatpush1.msra.mxu0 %v103
    %221 = vmatprep.subr.mxu0 0.0
    %222 = vmatpush1.msra.mxu0 %v104
    %223 = vmatprep.subr.mxu0 0.0
    %224 = vmatpush1.msra.mxu0 %v105
    %225 = vmatprep.subr.mxu0 0.0
    %226 = vmatpush1.msra.mxu0 %v106
    %227 = vmatprep.subr.mxu0 0.0
    %228 = vmatpush1.msra.mxu0 %v107
    %229 = vmatprep.subr.mxu0 0.0
    %230 = vmatpush1.msra.mxu0 %v108
    %231 = vmatprep.subr.mxu0 0.0
    %232 = vmatpush1.msra.mxu0 0.0
    %233 = vmatprep.subr.mxu0 0.0
    %234 = vmatpush1.msra.mxu0 0.0
    %235 = vmatprep.subr.mxu0 0.0
    %236 = vmatpush1.msra.mxu0 0.0
    %237 = vmatprep.subr.mxu0 0.0
    %238 = vmatpush1.msra.mxu0 0.0
    %239 = vmatprep.subr.mxu0 0.0
    %240 = vmatpush1.msra.mxu0 0.0
    %241 = vmatprep.subr.mxu0 0.0
    %242 = vmatpush1.msra.mxu0 0.0
    %243 = vmatprep.subr.mxu0 0.0
    %244 = vmatpush1.msra.mxu0 0.0
    %245 = vmatprep.subr.mxu0 0.0
    %246 = vmatpush1.msra.mxu0 0.0
    %247 = vmatprep.subr.mxu0 0.0
    %248 = vmatpush1.msra.mxu0 0.0
    %249 = vmatprep.subr.mxu0 0.0
    %250 = vmatpush1.msra.mxu0 0.0
    %251 = vmatprep.subr.mxu0 0.0
    %252 = vmatpush1.msra.mxu0 0.0
    %253 = vmatprep.subr.mxu0 0.0
    %254 = vmatpush1.msra.mxu0 0.0
    %255 = vmatprep.subr.mxu0 0.0
    %256 = vmatpush1.msra.mxu0 0.0
    %257 = vmatprep.subr.mxu0 0.0
    %258 = vmatpush1.msra.mxu0 0.0
    %259 = vmatprep.subr.mxu0 0.0
    %260 = vmatpush1.msra.mxu0 0.0
    %261 = vmatprep.subr.mxu0 0.0
    %262 = vmatpush1.msra.mxu0 0.0
    %263 = vmatprep.mubr.f32.mxu0 0.0
    %264 = vmatmul.mubr.f32.gmra.mrb[0].mxu0 %v52
    %v265 = vpop.f32.mrb[0].mxu0
    %v266 = vadd.f32 %v181, %v265
    %v267 = vpop.f32.mrb[0].mxu0
    %268 = vmatprep.mubr.f32.mxu0 0.0
    %269 = vmatmul.mubr.f32.gmra.mrb[0].mxu0 %v54
    %v270 = vpop.f32.mrb[0].mxu0
    %v271 = vadd.f32 %v186, %v270
    %v272 = vpop.f32.mrb[0].mxu0
    %273 = vmatprep.mubr.f32.mxu0 0.0
    %274 = vmatmul.mubr.f32.gmra.mrb[0].mxu0 %v56
    %v275 = vpop.f32.mrb[0].mxu0
    %v276 = vadd.f32 %v191, %v275
    %v277 = vpop.f32.mrb[0].mxu0
    %278 = vmatprep.mubr.f32.mxu0 0.0
    %279 = vmatmul.mubr.f32.gmra.mrb[0].mxu0 %v55
    %v280 = vpop.f32.mrb[0].mxu0
    %v281 = vadd.f32 %v196, %v280
    %v282 = vpop.f32.mrb[0].mxu0
    %283 = vdwg.mxu0
    %v284 = vmax.f32 %v266, 0.0
    %v285 = vmax.f32 %v271, 0.0
    %v286 = vmax.f32 %v276, 0.0
    %v287 = vmax.f32 %v281, 0.0
    %v288 = vld [vmem:[#allocation2 + $0x180] sm:$0xff]
    %v289 = vld [vmem:[#allocation2 + $0x188] sm:$0xff]
    %v290 = vld [vmem:[#allocation2 + $0x190] sm:$0xff]
    %v291 = vld [vmem:[#allocation2 + $0x198] sm:$0xf]
    %vm292 = vcmask 228352
    %v294 = vsel %vm292, %v288, 0
    %v297 = vsel %vm292, %v289, 0
    %v300 = vsel %vm292, %v290, 0
    %v303 = vsel %vm292, %v291, 0
    %v306 = vsel %vm49, %v287, 0
    %308 = vmatprep.subr.mxu0 0.0
    %309 = vmatpush1.msra.mxu0 %v284
    %310 = vmatprep.subr.mxu0 0.0
    %311 = vmatpush1.msra.mxu0 %v285
    %312 = vmatprep.subr.mxu0 0.0
    %313 = vmatpush1.msra.mxu0 %v286
    %314 = vmatprep.subr.mxu0 0.0
    %315 = vmatpush1.msra.mxu0 %v306
    %316 = vmatprep.subr.mxu0 0.0
    %317 = vmatpush1.msra.mxu0 0.0
    %318 = vmatprep.subr.mxu0 0.0
    %319 = vmatpush1.msra.mxu0 0.0
    %320 = vmatprep.subr.mxu0 0.0
    %321 = vmatpush1.msra.mxu0 0.0
    %322 = vmatprep.subr.mxu0 0.0
    %323 = vmatpush1.msra.mxu0 0.0
    %324 = vmatprep.subr.mxu0 0.0
    %325 = vmatpush1.msra.mxu0 0.0
    %326 = vmatprep.subr.mxu0 0.0
    %327 = vmatpush1.msra.mxu0 0.0
    %328 = vmatprep.subr.mxu0 0.0
    %329 = vmatpush1.msra.mxu0 0.0
    %330 = vmatprep.subr.mxu0 0.0
    %331 = vmatpush1.msra.mxu0 0.0
    %332 = vmatprep.subr.mxu0 0.0
    %333 = vmatpush1.msra.mxu0 0.0
    %334 = vmatprep.subr.mxu0 0.0
    %335 = vmatpush1.msra.mxu0 0.0
    %336 = vmatprep.subr.mxu0 0.0
    %337 = vmatpush1.msra.mxu0 0.0
    %338 = vmatprep.subr.mxu0 0.0
    %339 = vmatpush1.msra.mxu0 0.0
    %340 = vmatprep.subr.mxu0 0.0
    %341 = vmatpush1.msra.mxu0 0.0
    %342 = vmatprep.subr.mxu0 0.0
    %343 = vmatpush1.msra.mxu0 0.0
    %344 = vmatprep.subr.mxu0 0.0
    %345 = vmatpush1.msra.mxu0 0.0
    %346 = vmatprep.subr.mxu0 0.0
    %347 = vmatpush1.msra.mxu0 0.0
    %348 = vmatprep.subr.mxu0 0.0
    %349 = vmatpush1.msra.mxu0 0.0
    %350 = vmatprep.subr.mxu0 0.0
    %351 = vmatpush1.msra.mxu0 0.0
    %352 = vmatprep.subr.mxu0 0.0
    %353 = vmatpush1.msra.mxu0 0.0
    %354 = vmatprep.subr.mxu0 0.0
    %355 = vmatpush1.msra.mxu0 0.0
    %356 = vmatprep.subr.mxu0 0.0
    %357 = vmatpush1.msra.mxu0 0.0
    %358 = vmatprep.subr.mxu0 0.0
    %359 = vmatpush1.msra.mxu0 0.0
    %360 = vmatprep.subr.mxu0 0.0
    %361 = vmatpush1.msra.mxu0 0.0
    %362 = vmatprep.subr.mxu0 0.0
    %363 = vmatpush1.msra.mxu0 0.0
    %364 = vmatprep.subr.mxu0 0.0
    %365 = vmatpush1.msra.mxu0 0.0
    %366 = vmatprep.subr.mxu0 0.0
    %367 = vmatpush1.msra.mxu0 0.0
    %368 = vmatprep.subr.mxu0 0.0
    %369 = vmatpush1.msra.mxu0 0.0
    %370 = vmatprep.subr.mxu0 0.0
    %371 = vmatpush1.msra.mxu0 0.0
    %372 = vmatprep.mubr.f32.mxu0 0.0
    %373 = vmatmul.mubr.f32.gmra.mrb[0].mxu0 %v294
    %v374 = vpop.f32.mrb[0].mxu0
    %v375 = vadd.f32 0.0, %v374
    %v376 = vpop.f32.mrb[0].mxu0
    %377 = vmatprep.mubr.f32.mxu0 0.0
    %378 = vmatmul.mubr.f32.gmra.mrb[0].mxu0 %v297
    %v379 = vpop.f32.mrb[0].mxu0
    %v380 = vadd.f32 0.0, %v379
    %v381 = vpop.f32.mrb[0].mxu0
    %382 = vmatprep.mubr.f32.mxu0 0.0
    %383 = vmatmul.mubr.f32.gmra.mrb[0].mxu0 %v300
    %v384 = vpop.f32.mrb[0].mxu0
    %v385 = vadd.f32 0.0, %v384
    %v386 = vpop.f32.mrb[0].mxu0
    %387 = vmatprep.mubr.f32.mxu0 0.0
    %388 = vmatmul.mubr.f32.gmra.mrb[0].mxu0 %v303
    %v389 = vpop.f32.mrb[0].mxu0
    %v390 = vadd.f32 0.0, %v389
    %v391 = vpop.f32.mrb[0].mxu0
    %392 = vdwg.mxu0
    %vm396 = vcmask 1041408
    %v397 = vrot.slane %v380, 6
    %v398 = vrot.slane %v385, 6
    %v399 = vsel %vm396, %v397, %v398
    %v400 = vrot.slane %v390, 6
    %v401 = vsel %vm396, %v398, %v400
    %v405 = vrot.slane %v375, 2
    %v406 = vrot.slane %v380, 2
    %v407 = vsel %vm37, %v405, %v406
    %v410 = vld [vmem:[#allocation2 + $0x1a0] sm:$0xff]
    %v411 = vld [vmem:[#allocation2 + $0x1a8] sm:$0xff]
    %v412 = vld [vmem:[#allocation2 + $0x1b0] sm:$0xff]
    %v413 = vld [vmem:[#allocation2 + $0x1b8] sm:$0xff]
    %v414 = vld [vmem:[#allocation2 + $0x1c0] sm:$0xff]
    %v415 = vld [vmem:[#allocation2 + $0x1c8] sm:$0xff]
    %v416 = vld [vmem:[#allocation2 + $0x1d0] sm:$0xff]
    %v417 = vld [vmem:[#allocation2 + $0x1d8] sm:$0xff]
    %v418 = vld [vmem:[#allocation2 + $0x1e0] sm:$0xff]
    %v419 = vld [vmem:[#allocation2 + $0x1e8] sm:$0xff]
    %v420 = vld [vmem:[#allocation2 + $0x1f0] sm:$0xff]
    %v421 = vld [vmem:[#allocation2 + $0x1f8] sm:$0xff]
    %v422 = vld [vmem:[#allocation2 + $0x200] sm:$0xff]
    %v423 = vld [vmem:[#allocation2 + $0x208] sm:$0xff]
    %v424 = vld [vmem:[#allocation2 + $0x210] sm:$0xff]
    %v425 = vld [vmem:[#allocation2 + $0x218] sm:$0xff]
    %v426 = vld [vmem:[#allocation2 + $0x220] sm:$0xff]
    %v427 = vld [vmem:[#allocation2 + $0x228] sm:$0xff]
    %v428 = vld [vmem:[#allocation2 + $0x230] sm:$0xff]
    %v429 = vld [vmem:[#allocation2 + $0x238] sm:$0xff]
    %v430 = vld [vmem:[#allocation2 + $0x240] sm:$0xff]
    %v431 = vld [vmem:[#allocation2 + $0x248] sm:$0xff]
    %v432 = vld [vmem:[#allocation2 + $0x250] sm:$0xff]
    %v433 = vld [vmem:[#allocation2 + $0x258] sm:$0xff]
    %v434 = vld [vmem:[#allocation2 + $0x260] sm:$0xff]
    %v435 = vld [vmem:[#allocation2 + $0x268] sm:$0xff]
    %v436 = vld [vmem:[#allocation2 + $0x270] sm:$0xff]
    %v437 = vld [vmem:[#allocation2 + $0x278] sm:$0xff]
    %v438 = vld [vmem:[#allocation2 + $0x280] sm:$0xff]
    %v439 = vld [vmem:[#allocation2 + $0x288] sm:$0xff]
    %v440 = vld [vmem:[#allocation2 + $0x290] sm:$0xff]
    %v441 = vld [vmem:[#allocation2 + $0x298] sm:$0xff]
    %v442 = vld [vmem:[#allocation2 + $0x2a0] sm:$0xff]
    %v443 = vld [vmem:[#allocation2 + $0x2a8] sm:$0xff]
    %v444 = vld [vmem:[#allocation2 + $0x2b0] sm:$0xff]
    %v445 = vld [vmem:[#allocation2 + $0x2b8] sm:$0xff]
    %v446 = vld [vmem:[#allocation2 + $0x2c0] sm:$0xff]
    %v447 = vld [vmem:[#allocation2 + $0x2c8] sm:$0xff]
    %v448 = vld [vmem:[#allocation2 + $0x2d0] sm:$0xff]
    %v449 = vld [vmem:[#allocation2 + $0x2d8] sm:$0xff]
    %v450 = vld [vmem:[#allocation2 + $0x2e0] sm:$0xff]
    %v451 = vld [vmem:[#allocation2 + $0x2e8] sm:$0xff]
    %v452 = vld [vmem:[#allocation2 + $0x2f0] sm:$0xff]
    %v453 = vld [vmem:[#allocation2 + $0x2f8] sm:$0xff]
    %v454 = vld [vmem:[#allocation2 + $0x300] sm:$0xff]
    %v455 = vld [vmem:[#allocation2 + $0x308] sm:$0xff]
    %v456 = vld [vmem:[#allocation2 + $0x310] sm:$0xff]
    %v457 = vld [vmem:[#allocation2 + $0x318] sm:$0xff]
    %v458 = vld [vmem:[%s2 + $0x8] sm:$0x1]
    %v459 = vlaneseq
    %v460 = vshrl.u32 %v459, 7
    %v461 = vsub.s32 0, %v460
    %v462 = vrot.slane %v458, %v461
    %463 = vmatprep.subr.mxu0 0.0
    %464 = vmatpush1.msra.mxu0 %v410
    %465 = vmatprep.subr.mxu0 0.0
    %466 = vmatpush1.msra.mxu0 %v411
    %467 = vmatprep.subr.mxu0 0.0
    %468 = vmatpush1.msra.mxu0 %v412
    %469 = vmatprep.subr.mxu0 0.0
    %470 = vmatpush1.msra.mxu0 %v413
    %471 = vmatprep.subr.mxu0 0.0
    %472 = vmatpush1.msra.mxu0 %v414
    %473 = vmatprep.subr.mxu0 0.0
    %474 = vmatpush1.msra.mxu0 %v415
    %475 = vmatprep.subr.mxu0 0.0
    %476 = vmatpush1.msra.mxu0 %v416
    %477 = vmatprep.subr.mxu0 0.0
    %478 = vmatpush1.msra.mxu0 %v417
    %479 = vmatprep.subr.mxu0 0.0
    %480 = vmatpush1.msra.mxu0 %v418
    %481 = vmatprep.subr.mxu0 0.0
    %482 = vmatpush1.msra.mxu0 %v419
    %483 = vmatprep.subr.mxu0 0.0
    %484 = vmatpush1.msra.mxu0 %v420
    %485 = vmatprep.subr.mxu0 0.0
    %486 = vmatpush1.msra.mxu0 %v421
    %487 = vmatprep.subr.mxu0 0.0
    %488 = vmatpush1.msra.mxu0 %v422
    %489 = vmatprep.subr.mxu0 0.0
    %490 = vmatpush1.msra.mxu0 %v423
    %491 = vmatprep.subr.mxu0 0.0
    %492 = vmatpush1.msra.mxu0 %v424
    %493 = vmatprep.subr.mxu0 0.0
    %494 = vmatpush1.msra.mxu0 %v425
    %495 = vmatprep.subr.mxu0 0.0
    %496 = vmatpush1.msra.mxu0 %v426
    %497 = vmatprep.subr.mxu0 0.0
    %498 = vmatpush1.msra.mxu0 %v427
    %499 = vmatprep.subr.mxu0 0.0
    %500 = vmatpush1.msra.mxu0 %v428
    %501 = vmatprep.subr.mxu0 0.0
    %502 = vmatpush1.msra.mxu0 %v429
    %503 = vmatprep.subr.mxu0 0.0
    %504 = vmatpush1.msra.mxu0 %v430
    %505 = vmatprep.subr.mxu0 0.0
    %506 = vmatpush1.msra.mxu0 %v431
    %507 = vmatprep.subr.mxu0 0.0
    %508 = vmatpush1.msra.mxu0 %v432
    %509 = vmatprep.subr.mxu0 0.0
    %510 = vmatpush1.msra.mxu0 %v433
    %511 = vmatprep.subr.mxu0 0.0
    %512 = vmatpush1.msra.mxu0 %v434
    %513 = vmatprep.subr.mxu0 0.0
    %514 = vmatpush1.msra.mxu0 %v435
    %515 = vmatprep.subr.mxu0 0.0
    %516 = vmatpush1.msra.mxu0 %v436
    %517 = vmatprep.subr.mxu0 0.0
    %518 = vmatpush1.msra.mxu0 %v437
    %519 = vmatprep.subr.mxu0 0.0
    %520 = vmatpush1.msra.mxu0 %v438
    %521 = vmatprep.subr.mxu0 0.0
    %522 = vmatpush1.msra.mxu0 %v439
    %523 = vmatprep.subr.mxu0 0.0
    %524 = vmatpush1.msra.mxu0 %v440
    %525 = vmatprep.subr.mxu0 0.0
    %526 = vmatpush1.msra.mxu0 %v441
    %527 = vmatprep.mubr.f32.mxu0 %v399
    %528 = vmatmul.mubr.f32.gmra.mrb[0].mxu0 %v375
    %v529 = vpop.f32.mrb[0].mxu0
    %v530 = vadd.f32 %v462, %v529
    %v531 = vpop.f32.mrb[0].mxu0
    %532 = vmatprep.mubr.f32.mxu0 %v401
    %533 = vmatmul.mubr.f32.gmra.mrb[0].mxu0 %v380
    %v534 = vpop.f32.mrb[0].mxu0
    %v535 = vadd.f32 %v462, %v534
    %v536 = vpop.f32.mrb[0].mxu0
    %537 = vdwg.mxu0
    %538 = vmatprep.subr.mxu0 0.0
    %539 = vmatpush1.msra.mxu0 %v442
    %540 = vmatprep.subr.mxu0 0.0
    %541 = vmatpush1.msra.mxu0 %v443
    %542 = vmatprep.subr.mxu0 0.0
    %543 = vmatpush1.msra.mxu0 %v444
    %544 = vmatprep.subr.mxu0 0.0
    %545 = vmatpush1.msra.mxu0 %v445
    %546 = vmatprep.subr.mxu0 0.0
    %547 = vmatpush1.msra.mxu0 %v446
    %548 = vmatprep.subr.mxu0 0.0
    %549 = vmatpush1.msra.mxu0 %v447
    %550 = vmatprep.subr.mxu0 0.0
    %551 = vmatpush1.msra.mxu0 %v448
    %552 = vmatprep.subr.mxu0 0.0
    %553 = vmatpush1.msra.mxu0 %v449
    %554 = vmatprep.subr.mxu0 0.0
    %555 = vmatpush1.msra.mxu0 %v450
    %556 = vmatprep.subr.mxu0 0.0
    %557 = vmatpush1.msra.mxu0 %v451
    %558 = vmatprep.subr.mxu0 0.0
    %559 = vmatpush1.msra.mxu0 %v452
    %560 = vmatprep.subr.mxu0 0.0
    %561 = vmatpush1.msra.mxu0 %v453
    %562 = vmatprep.subr.mxu0 0.0
    %563 = vmatpush1.msra.mxu0 %v454
    %564 = vmatprep.subr.mxu0 0.0
    %565 = vmatpush1.msra.mxu0 %v455
    %566 = vmatprep.subr.mxu0 0.0
    %567 = vmatpush1.msra.mxu0 %v456
    %568 = vmatprep.subr.mxu0 0.0
    %569 = vmatpush1.msra.mxu0 %v457
    %570 = vmatprep.subr.mxu0 0.0
    %571 = vmatpush1.msra.mxu0 0.0
    %572 = vmatprep.subr.mxu0 0.0
    %573 = vmatpush1.msra.mxu0 0.0
    %574 = vmatprep.subr.mxu0 0.0
    %575 = vmatpush1.msra.mxu0 0.0
    %576 = vmatprep.subr.mxu0 0.0
    %577 = vmatpush1.msra.mxu0 0.0
    %578 = vmatprep.subr.mxu0 0.0
    %579 = vmatpush1.msra.mxu0 0.0
    %580 = vmatprep.subr.mxu0 0.0
    %581 = vmatpush1.msra.mxu0 0.0
    %582 = vmatprep.subr.mxu0 0.0
    %583 = vmatpush1.msra.mxu0 0.0
    %584 = vmatprep.subr.mxu0 0.0
    %585 = vmatpush1.msra.mxu0 0.0
    %586 = vmatprep.subr.mxu0 0.0
    %587 = vmatpush1.msra.mxu0 0.0
    %588 = vmatprep.subr.mxu0 0.0
    %589 = vmatpush1.msra.mxu0 0.0
    %590 = vmatprep.subr.mxu0 0.0
    %591 = vmatpush1.msra.mxu0 0.0
    %592 = vmatprep.subr.mxu0 0.0
    %593 = vmatpush1.msra.mxu0 0.0
    %594 = vmatprep.subr.mxu0 0.0
    %595 = vmatpush1.msra.mxu0 0.0
    %596 = vmatprep.subr.mxu0 0.0
    %597 = vmatpush1.msra.mxu0 0.0
    %598 = vmatprep.subr.mxu0 0.0
    %599 = vmatpush1.msra.mxu0 0.0
    %600 = vmatprep.subr.mxu0 0.0
    %601 = vmatpush1.msra.mxu0 0.0
    %602 = vmatprep.mubr.f32.mxu0 0.0
    %603 = vmatmul.mubr.f32.gmra.mrb[0].mxu0 %v407
    %v604 = vpop.f32.mrb[0].mxu0
    %v605 = vadd.f32 %v530, %v604
    %v606 = vpop.f32.mrb[0].mxu0
    %607 = vmatprep.mubr.f32.mxu0 0.0
    %608 = vmatmul.mubr.f32.gmra.mrb[0].mxu0 %v406
    %v609 = vpop.f32.mrb[0].mxu0
    %v610 = vadd.f32 %v535, %v609
    %v611 = vpop.f32.mrb[0].mxu0
    %612 = vdwg.mxu0
    %v613 = vmax.f32 %v605, 0.0
    %v614 = vmax.f32 %v610, 0.0
    %v616 = vrot.slane %v613, 2
    %v618 = vrot.slane %v613, 4
    %v620 = vrot.slane %v613, 6
    %v623 = vrot.slane %v614, 2
    %v625 = vld [vmem:[#allocation2 + $0x320] sm:$0xff]
    %v626 = vld [vmem:[#allocation2 + $0x328] sm:$0xff]
    %v627 = vld [vmem:[#allocation2 + $0x330] sm:$0xff]
    %v628 = vld [vmem:[#allocation2 + $0x338] sm:$0xff]
    %v629 = vld [vmem:[#allocation2 + $0x340] sm:$0xff]
    %v630 = vld [vmem:[#allocation2 + $0x348] sm:$0xff]
    %v631 = vld [vmem:[#allocation2 + $0x350] sm:$0xff]
    %v632 = vld [vmem:[#allocation2 + $0x358] sm:$0xff]
    %v633 = vld [vmem:[#allocation2 + $0x360] sm:$0xff]
    %v634 = vld [vmem:[#allocation2 + $0x368] sm:$0xff]
    %v635 = vld [vmem:[#allocation2 + $0x370] sm:$0xff]
    %v636 = vld [vmem:[#allocation2 + $0x378] sm:$0xff]
    %v637 = vld [vmem:[#allocation2 + $0x380] sm:$0xff]
    %v638 = vld [vmem:[#allocation2 + $0x388] sm:$0xff]
    %v639 = vld [vmem:[#allocation2 + $0x390] sm:$0xff]
    %v640 = vld [vmem:[#allocation2 + $0x398] sm:$0xff]
    %v641 = vld [vmem:[#allocation2 + $0x3a0] sm:$0xff]
    %v642 = vld [vmem:[#allocation2 + $0x3a8] sm:$0xff]
    %v643 = vld [vmem:[#allocation2 + $0x3b0] sm:$0xff]
    %v644 = vld [vmem:[#allocation2 + $0x3b8] sm:$0xff]
    %v645 = vld [vmem:[#allocation2 + $0x3c0] sm:$0xff]
    %v646 = vld [vmem:[#allocation2 + $0x3c8] sm:$0xff]
    %v647 = vld [vmem:[#allocation2 + $0x3d0] sm:$0xff]
    %v648 = vld [vmem:[#allocation2 + $0x3d8] sm:$0xff]
    %v649 = vld [vmem:[#allocation2 + $0x3e0] sm:$0xff]
    %v650 = vld [vmem:[#allocation2 + $0x3e8] sm:$0xff]
    %v651 = vld [vmem:[#allocation2 + $0x3f0] sm:$0xff]
    %v652 = vld [vmem:[#allocation2 + $0x3f8] sm:$0xff]
    %v653 = vld [vmem:[#allocation2 + $0x400] sm:$0xff]
    %v654 = vld [vmem:[#allocation2 + $0x408] sm:$0xff]
    %v655 = vld [vmem:[#allocation2 + $0x410] sm:$0xff]
    %v656 = vld [vmem:[#allocation2 + $0x418] sm:$0xff]
    %v657 = vld [vmem:[#allocation2 + $0x420] sm:$0xff]
    %v658 = vld [vmem:[#allocation2 + $0x428] sm:$0xff]
    %v659 = vld [vmem:[#allocation2 + $0x430] sm:$0xff]
    %v660 = vld [vmem:[#allocation2 + $0x438] sm:$0xff]
    %v661 = vld [vmem:[#allocation2 + $0x440] sm:$0xff]
    %v662 = vld [vmem:[#allocation2 + $0x448] sm:$0xff]
    %v663 = vld [vmem:[#allocation2 + $0x450] sm:$0xff]
    %v664 = vld [vmem:[#allocation2 + $0x458] sm:$0xff]
    %v665 = vld [vmem:[#allocation2 + $0x460] sm:$0xff]
    %v666 = vld [vmem:[#allocation2 + $0x468] sm:$0xff]
    %v667 = vld [vmem:[#allocation2 + $0x470] sm:$0xff]
    %v668 = vld [vmem:[#allocation2 + $0x478] sm:$0xff]
    %v669 = vld [vmem:[#allocation2 + $0x480] sm:$0xff]
    %v670 = vld [vmem:[#allocation2 + $0x488] sm:$0xff]
    %v671 = vld [vmem:[#allocation2 + $0x490] sm:$0xff]
    %v672 = vld [vmem:[#allocation2 + $0x498] sm:$0xff]
    %v673 = vld [vmem:[#allocation2 + $0x4a0] sm:$0xff]
    %v674 = vld [vmem:[#allocation2 + $0x4a8] sm:$0xff]
    %v675 = vld [vmem:[#allocation2 + $0x4b0] sm:$0xff]
    %v676 = vld [vmem:[#allocation2 + $0x4b8] sm:$0xff]
    %v677 = vld [vmem:[#allocation2 + $0x4c0] sm:$0xff]
    %v678 = vld [vmem:[#allocation2 + $0x4c8] sm:$0xff]
    %v679 = vld [vmem:[#allocation2 + $0x4d0] sm:$0xff]
    %v680 = vld [vmem:[#allocation2 + $0x4d8] sm:$0xff]
    %v681 = vld [vmem:[#allocation2 + $0x4e0] sm:$0xff]
    %v682 = vld [vmem:[#allocation2 + $0x4e8] sm:$0xff]
    %v683 = vld [vmem:[#allocation2 + $0x4f0] sm:$0xff]
    %v684 = vld [vmem:[#allocation2 + $0x4f8] sm:$0xff]
    %v685 = vld [vmem:[#allocation2 + $0x500] sm:$0xff]
    %v686 = vld [vmem:[#allocation2 + $0x508] sm:$0xff]
    %v687 = vld [vmem:[#allocation2 + $0x510] sm:$0xff]
    %v688 = vld [vmem:[#allocation2 + $0x518] sm:$0xff]
    %v689 = vld [vmem:[#allocation2 + $0x520] sm:$0xff]
    %v690 = vld [vmem:[#allocation2 + $0x528] sm:$0xff]
    %v691 = vld [vmem:[#allocation2 + $0x530] sm:$0xff]
    %v692 = vld [vmem:[#allocation2 + $0x538] sm:$0xff]
    %v693 = vld [vmem:[#allocation2 + $0x540] sm:$0xff]
    %v694 = vld [vmem:[#allocation2 + $0x548] sm:$0xff]
    %v695 = vld [vmem:[#allocation2 + $0x550] sm:$0xff]
    %v696 = vld [vmem:[#allocation2 + $0x558] sm:$0xff]
    %v697 = vld [vmem:[#allocation2 + $0x560] sm:$0xff]
    %v698 = vld [vmem:[#allocation2 + $0x568] sm:$0xff]
    %v699 = vld [vmem:[#allocation2 + $0x570] sm:$0xff]
    %v700 = vld [vmem:[#allocation2 + $0x578] sm:$0xff]
    %v701 = vld [vmem:[#allocation2 + $0x580] sm:$0xff]
    %v702 = vld [vmem:[#allocation2 + $0x588] sm:$0xff]
    %v703 = vld [vmem:[#allocation2 + $0x590] sm:$0xff]
    %v704 = vld [vmem:[#allocation2 + $0x598] sm:$0xff]
    %v705 = vld [vmem:[#allocation2 + $0x5a0] sm:$0xff]
    %v706 = vld [vmem:[#allocation2 + $0x5a8] sm:$0xff]
    %v707 = vld [vmem:[#allocation2 + $0x5b0] sm:$0xff]
    %v708 = vld [vmem:[#allocation2 + $0x5b8] sm:$0xff]
    %v709 = vld [vmem:[#allocation2 + $0x5c0] sm:$0xff]
    %v710 = vld [vmem:[#allocation2 + $0x5c8] sm:$0xff]
    %v711 = vld [vmem:[#allocation2 + $0x5d0] sm:$0xff]
    %v712 = vld [vmem:[#allocation2 + $0x5d8] sm:$0xff]
    %v713 = vld [vmem:[#allocation2 + $0x5e0] sm:$0xff]
    %v714 = vld [vmem:[#allocation2 + $0x5e8] sm:$0xff]
    %v715 = vld [vmem:[#allocation2 + $0x5f0] sm:$0xff]
    %v716 = vld [vmem:[#allocation2 + $0x5f8] sm:$0xff]
    %v717 = vld [vmem:[#allocation2 + $0x600] sm:$0xff]
    %v718 = vld [vmem:[#allocation2 + $0x608] sm:$0xff]
    %v719 = vld [vmem:[#allocation2 + $0x610] sm:$0xff]
    %v720 = vld [vmem:[#allocation2 + $0x618] sm:$0xff]
    %v721 = vld [vmem:[%s2 + $0x10] sm:$0x1]
    %v722 = vlaneseq
    %v723 = vshrl.u32 %v722, 7
    %v724 = vsub.s32 0, %v723
    %v725 = vrot.slane %v721, %v724
    %726 = vmatprep.subr.mxu0 0.0
    %727 = vmatpush1.msra.mxu0 %v625
    %728 = vmatprep.subr.mxu0 0.0
    %729 = vmatpush1.msra.mxu0 %v626
    %730 = vmatprep.subr.mxu0 0.0
    %731 = vmatpush1.msra.mxu0 %v627
    %732 = vmatprep.subr.mxu0 0.0
    %733 = vmatpush1.msra.mxu0 %v628
    %734 = vmatprep.subr.mxu0 0.0
    %735 = vmatpush1.msra.mxu0 %v629
    %736 = vmatprep.subr.mxu0 0.0
    %737 = vmatpush1.msra.mxu0 %v630
    %738 = vmatprep.subr.mxu0 0.0
    %739 = vmatpush1.msra.mxu0 %v631
    %740 = vmatprep.subr.mxu0 0.0
    %741 = vmatpush1.msra.mxu0 %v632
    %742 = vmatprep.subr.mxu0 0.0
    %743 = vmatpush1.msra.mxu0 %v633
    %744 = vmatprep.subr.mxu0 0.0
    %745 = vmatpush1.msra.mxu0 %v634
    %746 = vmatprep.subr.mxu0 0.0
    %747 = vmatpush1.msra.mxu0 %v635
    %748 = vmatprep.subr.mxu0 0.0
    %749 = vmatpush1.msra.mxu0 %v636
    %750 = vmatprep.subr.mxu0 0.0
    %751 = vmatpush1.msra.mxu0 %v637
    %752 = vmatprep.subr.mxu0 0.0
    %753 = vmatpush1.msra.mxu0 %v638
    %754 = vmatprep.subr.mxu0 0.0
    %755 = vmatpush1.msra.mxu0 %v639
    %756 = vmatprep.subr.mxu0 0.0
    %757 = vmatpush1.msra.mxu0 %v640
    %758 = vmatprep.subr.mxu0 0.0
    %759 = vmatpush1.msra.mxu0 %v641
    %760 = vmatprep.subr.mxu0 0.0
    %761 = vmatpush1.msra.mxu0 %v642
    %762 = vmatprep.subr.mxu0 0.0
    %763 = vmatpush1.msra.mxu0 %v643
    %764 = vmatprep.subr.mxu0 0.0
    %765 = vmatpush1.msra.mxu0 %v644
    %766 = vmatprep.subr.mxu0 0.0
    %767 = vmatpush1.msra.mxu0 %v645
    %768 = vmatprep.subr.mxu0 0.0
    %769 = vmatpush1.msra.mxu0 %v646
    %770 = vmatprep.subr.mxu0 0.0
    %771 = vmatpush1.msra.mxu0 %v647
    %772 = vmatprep.subr.mxu0 0.0
    %773 = vmatpush1.msra.mxu0 %v648
    %774 = vmatprep.subr.mxu0 0.0
    %775 = vmatpush1.msra.mxu0 %v649
    %776 = vmatprep.subr.mxu0 0.0
    %777 = vmatpush1.msra.mxu0 %v650
    %778 = vmatprep.subr.mxu0 0.0
    %779 = vmatpush1.msra.mxu0 %v651
    %780 = vmatprep.subr.mxu0 0.0
    %781 = vmatpush1.msra.mxu0 %v652
    %782 = vmatprep.subr.mxu0 0.0
    %783 = vmatpush1.msra.mxu0 %v653
    %784 = vmatprep.subr.mxu0 0.0
    %785 = vmatpush1.msra.mxu0 %v654
    %786 = vmatprep.subr.mxu0 0.0
    %787 = vmatpush1.msra.mxu0 %v655
    %788 = vmatprep.subr.mxu0 0.0
    %789 = vmatpush1.msra.mxu0 %v656
    %790 = vmatprep.mubr.f32.mxu0 %v616
    %791 = vmatmul.mubr.f32.gmra.mrb[0].mxu0 %v613
    %v792 = vpop.f32.mrb[0].mxu0
    %v793 = vadd.f32 %v725, %v792
    %v794 = vpop.f32.mrb[0].mxu0
    %795 = vdwg.mxu0
    %796 = vmatprep.subr.mxu0 0.0
    %797 = vmatpush1.msra.mxu0 %v657
    %798 = vmatprep.subr.mxu0 0.0
    %799 = vmatpush1.msra.mxu0 %v658
    %800 = vmatprep.subr.mxu0 0.0
    %801 = vmatpush1.msra.mxu0 %v659
    %802 = vmatprep.subr.mxu0 0.0
    %803 = vmatpush1.msra.mxu0 %v660
    %804 = vmatprep.subr.mxu0 0.0
    %805 = vmatpush1.msra.mxu0 %v661
    %806 = vmatprep.subr.mxu0 0.0
    %807 = vmatpush1.msra.mxu0 %v662
    %808 = vmatprep.subr.mxu0 0.0
    %809 = vmatpush1.msra.mxu0 %v663
    %810 = vmatprep.subr.mxu0 0.0
    %811 = vmatpush1.msra.mxu0 %v664
    %812 = vmatprep.subr.mxu0 0.0
    %813 = vmatpush1.msra.mxu0 %v665
    %814 = vmatprep.subr.mxu0 0.0
    %815 = vmatpush1.msra.mxu0 %v666
    %816 = vmatprep.subr.mxu0 0.0
    %817 = vmatpush1.msra.mxu0 %v667
    %818 = vmatprep.subr.mxu0 0.0
    %819 = vmatpush1.msra.mxu0 %v668
    %820 = vmatprep.subr.mxu0 0.0
    %821 = vmatpush1.msra.mxu0 %v669
    %822 = vmatprep.subr.mxu0 0.0
    %823 = vmatpush1.msra.mxu0 %v670
    %824 = vmatprep.subr.mxu0 0.0
    %825 = vmatpush1.msra.mxu0 %v671
    %826 = vmatprep.subr.mxu0 0.0
    %827 = vmatpush1.msra.mxu0 %v672
    %828 = vmatprep.subr.mxu0 0.0
    %829 = vmatpush1.msra.mxu0 %v673
    %830 = vmatprep.subr.mxu0 0.0
    %831 = vmatpush1.msra.mxu0 %v674
    %832 = vmatprep.subr.mxu0 0.0
    %833 = vmatpush1.msra.mxu0 %v675
    %834 = vmatprep.subr.mxu0 0.0
    %835 = vmatpush1.msra.mxu0 %v676
    %836 = vmatprep.subr.mxu0 0.0
    %837 = vmatpush1.msra.mxu0 %v677
    %838 = vmatprep.subr.mxu0 0.0
    %839 = vmatpush1.msra.mxu0 %v678
    %840 = vmatprep.subr.mxu0 0.0
    %841 = vmatpush1.msra.mxu0 %v679
    %842 = vmatprep.subr.mxu0 0.0
    %843 = vmatpush1.msra.mxu0 %v680
    %844 = vmatprep.subr.mxu0 0.0
    %845 = vmatpush1.msra.mxu0 %v681
    %846 = vmatprep.subr.mxu0 0.0
    %847 = vmatpush1.msra.mxu0 %v682
    %848 = vmatprep.subr.mxu0 0.0
    %849 = vmatpush1.msra.mxu0 %v683
    %850 = vmatprep.subr.mxu0 0.0
    %851 = vmatpush1.msra.mxu0 %v684
    %852 = vmatprep.subr.mxu0 0.0
    %853 = vmatpush1.msra.mxu0 %v685
    %854 = vmatprep.subr.mxu0 0.0
    %855 = vmatpush1.msra.mxu0 %v686
    %856 = vmatprep.subr.mxu0 0.0
    %857 = vmatpush1.msra.mxu0 %v687
    %858 = vmatprep.subr.mxu0 0.0
    %859 = vmatpush1.msra.mxu0 %v688
    %860 = vmatprep.mubr.f32.mxu0 %v620
    %861 = vmatmul.mubr.f32.gmra.mrb[0].mxu0 %v618
    %v862 = vpop.f32.mrb[0].mxu0
    %v863 = vadd.f32 %v793, %v862
    %v864 = vpop.f32.mrb[0].mxu0
    %865 = vdwg.mxu0
    %866 = vmatprep.subr.mxu0 0.0
    %867 = vmatpush1.msra.mxu0 %v689
    %868 = vmatprep.subr.mxu0 0.0
    %869 = vmatpush1.msra.mxu0 %v690
    %870 = vmatprep.subr.mxu0 0.0
    %871 = vmatpush1.msra.mxu0 %v691
    %872 = vmatprep.subr.mxu0 0.0
    %873 = vmatpush1.msra.mxu0 %v692
    %874 = vmatprep.subr.mxu0 0.0
    %875 = vmatpush1.msra.mxu0 %v693
    %876 = vmatprep.subr.mxu0 0.0
    %877 = vmatpush1.msra.mxu0 %v694
    %878 = vmatprep.subr.mxu0 0.0
    %879 = vmatpush1.msra.mxu0 %v695
    %880 = vmatprep.subr.mxu0 0.0
    %881 = vmatpush1.msra.mxu0 %v696
    %882 = vmatprep.subr.mxu0 0.0
    %883 = vmatpush1.msra.mxu0 %v697
    %884 = vmatprep.subr.mxu0 0.0
    %885 = vmatpush1.msra.mxu0 %v698
    %886 = vmatprep.subr.mxu0 0.0
    %887 = vmatpush1.msra.mxu0 %v699
    %888 = vmatprep.subr.mxu0 0.0
    %889 = vmatpush1.msra.mxu0 %v700
    %890 = vmatprep.subr.mxu0 0.0
    %891 = vmatpush1.msra.mxu0 %v701
    %892 = vmatprep.subr.mxu0 0.0
    %893 = vmatpush1.msra.mxu0 %v702
    %894 = vmatprep.subr.mxu0 0.0
    %895 = vmatpush1.msra.mxu0 %v703
    %896 = vmatprep.subr.mxu0 0.0
    %897 = vmatpush1.msra.mxu0 %v704
    %898 = vmatprep.subr.mxu0 0.0
    %899 = vmatpush1.msra.mxu0 %v705
    %900 = vmatprep.subr.mxu0 0.0
    %901 = vmatpush1.msra.mxu0 %v706
    %902 = vmatprep.subr.mxu0 0.0
    %903 = vmatpush1.msra.mxu0 %v707
    %904 = vmatprep.subr.mxu0 0.0
    %905 = vmatpush1.msra.mxu0 %v708
    %906 = vmatprep.subr.mxu0 0.0
    %907 = vmatpush1.msra.mxu0 %v709
    %908 = vmatprep.subr.mxu0 0.0
    %909 = vmatpush1.msra.mxu0 %v710
    %910 = vmatprep.subr.mxu0 0.0
    %911 = vmatpush1.msra.mxu0 %v711
    %912 = vmatprep.subr.mxu0 0.0
    %913 = vmatpush1.msra.mxu0 %v712
    %914 = vmatprep.subr.mxu0 0.0
    %915 = vmatpush1.msra.mxu0 %v713
    %916 = vmatprep.subr.mxu0 0.0
    %917 = vmatpush1.msra.mxu0 %v714
    %918 = vmatprep.subr.mxu0 0.0
    %919 = vmatpush1.msra.mxu0 %v715
    %920 = vmatprep.subr.mxu0 0.0
    %921 = vmatpush1.msra.mxu0 %v716
    %922 = vmatprep.subr.mxu0 0.0
    %923 = vmatpush1.msra.mxu0 %v717
    %924 = vmatprep.subr.mxu0 0.0
    %925 = vmatpush1.msra.mxu0 %v718
    %926 = vmatprep.subr.mxu0 0.0
    %927 = vmatpush1.msra.mxu0 %v719
    %928 = vmatprep.subr.mxu0 0.0
    %929 = vmatpush1.msra.mxu0 %v720
    %930 = vmatprep.mubr.f32.mxu0 %v623
    %931 = vmatmul.mubr.f32.gmra.mrb[0].mxu0 %v614
    %v932 = vpop.f32.mrb[0].mxu0
    %v933 = vadd.f32 %v863, %v932
    %v934 = vpop.f32.mrb[0].mxu0
    %935 = vdwg.mxu0
    %v936 = vmax.f32 %v933, 0.0
    %v937 = vld [vmem:[#allocation2 + $0x620] sm:$0xff]
    %v938 = vld [vmem:[#allocation2 + $0x628] sm:$0xff]
    %v939 = vld [vmem:[#allocation2 + $0x630] sm:$0xff]
    %v940 = vld [vmem:[#allocation2 + $0x638] sm:$0xff]
    %v941 = vld [vmem:[%s2 + $0x18] sm:$0x1]
    %v942 = vlaneseq
    %v943 = vshrl.u32 %v942, 7
    %v944 = vsub.s32 0, %v943
    %v945 = vrot.slane %v941, %v944
    %vm946 = vcmask 261120
    %v948 = vsel %vm946, %v936, 0
    %950 = vmatprep.subr.mxu0 0.0
    %951 = vmatpush1.msra.mxu0 %v937
    %952 = vmatprep.subr.mxu0 0.0
    %953 = vmatpush1.msra.mxu0 %v938
    %954 = vmatprep.subr.mxu0 0.0
    %955 = vmatpush1.msra.mxu0 %v939
    %956 = vmatprep.subr.mxu0 0.0
    %957 = vmatpush1.msra.mxu0 %v940
    %958 = vmatprep.subr.mxu0 0.0
    %959 = vmatpush1.msra.mxu0 0.0
    %960 = vmatprep.subr.mxu0 0.0
    %961 = vmatpush1.msra.mxu0 0.0
    %962 = vmatprep.subr.mxu0 0.0
    %963 = vmatpush1.msra.mxu0 0.0
    %964 = vmatprep.subr.mxu0 0.0
    %965 = vmatpush1.msra.mxu0 0.0
    %966 = vmatprep.subr.mxu0 0.0
    %967 = vmatpush1.msra.mxu0 0.0
    %968 = vmatprep.subr.mxu0 0.0
    %969 = vmatpush1.msra.mxu0 0.0
    %970 = vmatprep.subr.mxu0 0.0
    %971 = vmatpush1.msra.mxu0 0.0
    %972 = vmatprep.subr.mxu0 0.0
    %973 = vmatpush1.msra.mxu0 0.0
    %974 = vmatprep.subr.mxu0 0.0
    %975 = vmatpush1.msra.mxu0 0.0
    %976 = vmatprep.subr.mxu0 0.0
    %977 = vmatpush1.msra.mxu0 0.0
    %978 = vmatprep.subr.mxu0 0.0
    %979 = vmatpush1.msra.mxu0 0.0
    %980 = vmatprep.subr.mxu0 0.0
    %981 = vmatpush1.msra.mxu0 0.0
    %982 = vmatprep.subr.mxu0 0.0
    %983 = vmatpush1.msra.mxu0 0.0
    %984 = vmatprep.subr.mxu0 0.0
    %985 = vmatpush1.msra.mxu0 0.0
    %986 = vmatprep.subr.mxu0 0.0
    %987 = vmatpush1.msra.mxu0 0.0
    %988 = vmatprep.subr.mxu0 0.0
    %989 = vmatpush1.msra.mxu0 0.0
    %990 = vmatprep.subr.mxu0 0.0
    %991 = vmatpush1.msra.mxu0 0.0
    %992 = vmatprep.subr.mxu0 0.0
    %993 = vmatpush1.msra.mxu0 0.0
    %994 = vmatprep.subr.mxu0 0.0
    %995 = vmatpush1.msra.mxu0 0.0
    %996 = vmatprep.subr.mxu0 0.0
    %997 = vmatpush1.msra.mxu0 0.0
    %998 = vmatprep.subr.mxu0 0.0
    %999 = vmatpush1.msra.mxu0 0.0
    %1000 = vmatprep.subr.mxu0 0.0
    %1001 = vmatpush1.msra.mxu0 0.0
    %1002 = vmatprep.subr.mxu0 0.0
    %1003 = vmatpush1.msra.mxu0 0.0
    %1004 = vmatprep.subr.mxu0 0.0
    %1005 = vmatpush1.msra.mxu0 0.0
    %1006 = vmatprep.subr.mxu0 0.0
    %1007 = vmatpush1.msra.mxu0 0.0
    %1008 = vmatprep.subr.mxu0 0.0
    %1009 = vmatpush1.msra.mxu0 0.0
    %1010 = vmatprep.subr.mxu0 0.0
    %1011 = vmatpush1.msra.mxu0 0.0
    %1012 = vmatprep.subr.mxu0 0.0
    %1013 = vmatpush1.msra.mxu0 0.0
    %1014 = vmatprep.mubr.f32.mxu0 0.0
    %1015 = vmatmul.mubr.f32.gmra.mrb[0].mxu0 %v948
    %v1016 = vpop.f32.mrb[0].mxu0
    %v1017 = vadd.f32 %v945, %v1016
    %v1018 = vpop.f32.mrb[0].mxu0
    %1019 = vdwg.mxu0
    %vm1020 = vcmask 74752
    %1021 = vst.msk [vmem:[#allocation5] sm:$0x3] %vm1020, %v1017
    // Predicated region
    $region18: #{forward.1} parent=1 // pred_check
      _
    $region19: #{forward.1} parent=1 // pred_check_branch
      %1023 = sbr.rel (0) target = $region21
    $region20: #{forward.1} parent=1 // pred_region
      %s1025 = ssub.s32 32, 32
      %1026 = vsyncadd [#allocation4], %s1025
      %s1028 = sshll.u32 [#allocation5], 4
      %s1029 = int_to_ptr.vmem [resolvable:$true] %s1028
      %1031 = dma.vmem_to_hbm [thread:$0]  %s1029, 32, %s3, [#allocation4]
    $region21: #{forward.1} parent=1 // pred_fallthru
      _
    // Predicated region
    $region22: #{forward.1} parent=1 // pred_check
      _
    $region23: #{forward.1} parent=1 // pred_check_branch
      %1033 = sbr.rel (0) target = $region25
    $region24: #{forward.1} parent=1 // pred_region
      %1034 = dma.done [#allocation4], 32
    $region25: #{forward.1} parent=1 // pred_fallthru
      _
    %1035 = vsyncpa [#allocation3], 1
    %1036 = vsyncpa [#allocation4], 1

</llo_original>
